<compile_context>
chip_gen: v5e
topology: v5e:2x2
jax: 0.10.0
libtpu: 0.0.40
codegen_flags: <defaults>
</compile_context>

<pallas_src>
import functools

import jax
import jax.numpy as jnp
from jax.experimental import pallas as pl
from jax.experimental.pallas import tpu as pltpu


def _pair_diff_loss_kernel(pos_ref, neg_ref, out_ref, acc_ref, *,
                           margin, total_n, needs_mask):
    """Grid = (splits, tiles_per_split).  acc_ref: (8, 128) f32 partial sums."""
    i = pl.program_id(1)

    @pl.when(i == 0)
    def _init():
        acc_ref[...] = jnp.zeros_like(acc_ref)

    tr, lanes = pos_ref.shape
    hinge = jnp.maximum(
        margin
        + pos_ref[...].astype(jnp.float32)
        - neg_ref[...].astype(jnp.float32),
        0.0,
    )

    if needs_mask:
        # Zero out the padded / out-of-bounds tail (flat element index >= n).
        tile_idx = pl.program_id(0) * pl.num_programs(1) + i
        row_ids = tile_idx * tr + jax.lax.broadcasted_iota(
            jnp.int32, (tr, lanes), 0)
        flat_ids = row_ids * lanes + jax.lax.broadcasted_iota(
            jnp.int32, (tr, lanes), 1)
        hinge = jnp.where(flat_ids < total_n, hinge, 0.0)

    # Row-group accumulation: pure VPU vector adds into an (8, 128) vreg-shaped
    # accumulator; no cross-sublane/cross-lane reduce in the hot loop.
    acc_ref[...] += hinge.reshape(tr // 8, 8, lanes).sum(axis=0)

    @pl.when(i == pl.num_programs(1) - 1)
    def _finalize():
        # One (8,128) -> scalar collapse per core, off the hot loop.
        out_ref[...] = jnp.sum(acc_ref[...], keepdims=True)


def _round_up(x, m):
    return ((x + m - 1) // m) * m


def pair_diff_loss(pos_score, neg_score, margin=5.0, *, tile_rows=None):
    """mean(relu(margin + pos_score - neg_score)) for arrays of any (equal) shape.

    bf16 inputs are encouraged: the kernel is HBM-read-bound and accumulates in
    f32 regardless, so bf16 roughly halves wall-clock on every TPU generation.
    """
    assert pos_score.shape == neg_score.shape
    if pos_score.dtype != neg_score.dtype:
        common = jnp.promote_types(pos_score.dtype, neg_score.dtype)
        pos_score = pos_score.astype(common)
        neg_score = neg_score.astype(common)

    lanes = 128
    itemsize = jnp.dtype(pos_score.dtype).itemsize
    sub = max(8, 32 // itemsize)      # sublane tile: 8 f32 / 16 bf16 / 32 int8
    total_n = int(pos_score.size)
    assert total_n > 0

    # View as (rows, 128) with rows a multiple of the sublane tile.  The small
    # zero-pad copy only happens for sizes that are not already (k*sub, 128).
    rows = _round_up(pl.cdiv(total_n, lanes), sub)
    padded_n = rows * lanes
    pos = pos_score.reshape(-1)
    neg = neg_score.reshape(-1)
    if padded_n != total_n:
        pos = jnp.pad(pos, (0, padded_n - total_n))
        neg = jnp.pad(neg, (0, padded_n - total_n))
    pos = pos.reshape(rows, lanes)
    neg = neg.reshape(rows, lanes)

    # ---- Tile selection -----------------------------------------------------
    if tile_rows is None:
        # ~4 MiB per input tile -> >= 8 MiB of HBM bytes streamed per grid
        # step (8192 rows f32, 16384 rows bf16): amortizes the ~0.35us/step
        # fixed overhead on v5e/v6e/v7x.
        tile_rows = max(sub, ((4 << 20) // (lanes * itemsize)) // sub * sub)
    tr = max(sub, _round_up(min(tile_rows, rows), sub))
    num_tiles = pl.cdiv(rows, tr)

    # Megacore: make the tile count even whenever possible so the leading
    # "parallel" grid axis splits the rows across both TensorCores on v7x
    # (it is just an outer sequential loop on single-core v5e/v6e).
    if num_tiles % 2:
        if num_tiles == 1:
            if rows > sub:
                tr = _round_up(pl.cdiv(rows, 2), sub)
                num_tiles = pl.cdiv(rows, tr)
        else:
            tr2 = _round_up(pl.cdiv(rows, num_tiles + 1), sub)
            if pl.cdiv(rows, tr2) % 2 == 0:
                tr = tr2
                num_tiles = pl.cdiv(rows, tr2)
    num_splits = 2 if num_tiles % 2 == 0 else 1
    tiles_per_split = num_tiles // num_splits

    # Mask needed iff the tiled coverage exceeds the true element count
    # (covers both the explicit zero padding and partial last-block garbage).
    needs_mask = (num_tiles * tr * lanes) != total_n

    kernel = functools.partial(
        _pair_diff_loss_kernel,
        margin=float(margin), total_n=total_n, needs_mask=needs_mask)

    def row_block(c, i):
        return (c * tiles_per_split + i, 0)

    # 2 inputs x 2 pipeline buffers x tile bytes, plus headroom; raised
    # explicitly so the large default tiles are safe on v5e's 16 MiB scoped
    # default while staying well inside v7x's 64 MiB physical VMEM.
    tile_bytes = tr * lanes * itemsize
    vmem_limit = int(min(max(4 * tile_bytes + (8 << 20), 32 << 20), 100 << 20))

    partials = pl.pallas_call(
        kernel,
        out_shape=jax.ShapeDtypeStruct((num_splits, 1), jnp.float32),
        grid_spec=pltpu.PrefetchScalarGridSpec(
            num_scalar_prefetch=0,
            grid=(num_splits, tiles_per_split),
            in_specs=[
                pl.BlockSpec((tr, lanes), row_block),   # pos_score tile
                pl.BlockSpec((tr, lanes), row_block),   # neg_score tile
            ],
            # Per-core partial sum; resident across the inner (reduction) axis.
            out_specs=pl.BlockSpec((1, 1), lambda c, i: (c, 0)),
            scratch_shapes=[pltpu.VMEM((8, lanes), jnp.float32)],
        ),
        compiler_params=pltpu.CompilerParams(
            dimension_semantics=("parallel", "arbitrary"),
            vmem_limit_bytes=vmem_limit,
        ),
        cost_estimate=pl.CostEstimate(
            flops=3 * total_n,
            transcendentals=0,
            bytes_accessed=int(pos.nbytes) + int(neg.nbytes) + 4 * num_splits,
        ),
    )(pos, neg)

    return jnp.sum(partials) / total_n


def pair_diff_loss_ref(pos_score, neg_score, margin=5.0):
    p = pos_score.astype(jnp.float32)
    n = neg_score.astype(jnp.float32)
    return jnp.mean(jnp.maximum(margin + p - n, 0.0))


if __name__ == "__main__":
    key = jax.random.PRNGKey(0)
    k1, k2, k3, k4, k5, k6 = jax.random.split(key, 6)

    # Test 1: 1-D score vectors (typical ranking-loss usage), size not a
    # multiple of 128 -> exercises padding + in-kernel tail mask.
    pos1 = jax.random.normal(k1, (257,), dtype=jnp.float32)
    neg1 = jax.random.normal(k2, (257,), dtype=jnp.float32)
    loss1 = jax.block_until_ready(pair_diff_loss(pos1, neg1, margin=5.0))
    ref1 = pair_diff_loss_ref(pos1, neg1, margin=5.0)
    assert jnp.allclose(loss1, ref1, rtol=1e-5, atol=1e-5), (loss1, ref1)

    # Test 2: clean multi-tile path exercising the 2-way megacore split
    # (rows=256, tile_rows=64 -> 4 tiles -> grid (2, 2), no mask needed).
    pos2 = jax.random.normal(k3, (256, 128), dtype=jnp.float32)
    neg2 = jax.random.normal(k4, (256, 128), dtype=jnp.float32)
    loss2 = jax.block_until_ready(
        pair_diff_loss(pos2, neg2, margin=5.0, tile_rows=64))
    ref2 = pair_diff_loss_ref(pos2, neg2, margin=5.0)
    assert jnp.allclose(loss2, ref2, rtol=1e-5, atol=1e-5), (loss2, ref2)

    # Test 3: bf16 fast path (halved HBM traffic) with a ragged row count ->
    # 16-row sublane tiles, padding + mask + 2-way split all active.
    pos3 = jax.random.normal(k5, (200, 128), dtype=jnp.bfloat16)
    neg3 = jax.random.normal(k6, (200, 128), dtype=jnp.bfloat16)
    loss3 = jax.block_until_ready(
        pair_diff_loss(pos3, neg3, margin=5.0, tile_rows=64))
    ref3 = pair_diff_loss_ref(pos3, neg3, margin=5.0)
    assert jnp.allclose(loss3, ref3, rtol=1e-4, atol=1e-4), (loss3, ref3)

    print("KERNEL_OK")
</pallas_src>

<mosaic_0001>
module attributes {stable_mosaic.version = 11 : i64} {
  func.func @_pair_diff_loss_kernel(%arg0: i32, %arg1: i32, %arg2: memref<8x128xf32, #tpu.memory_space<vmem>>, %arg3: memref<8x128xf32, #tpu.memory_space<vmem>>, %arg4: memref<1x1xf32, #tpu.memory_space<vmem>>, %arg5: memref<8x128xf32, #tpu.memory_space<vmem>>) attributes {dimension_semantics = [#tpu.dimension_semantics<parallel>, #tpu.dimension_semantics<arbitrary>], iteration_bounds = array<i64: 1, 1>, scalar_prefetch = 0 : i64, scratch_operands = 1 : i64, tpu.core_type = #tpu.core_type<tc>, window_params = [{transform_indices = @transform_0, window_bounds = array<i64: 8, 128>}, {transform_indices = @transform_1, window_bounds = array<i64: 8, 128>}, {transform_indices = @transform_2, window_bounds = array<i64: 1, 1>}]} {
    %c0_i32 = arith.constant 0 : i32
    %0 = arith.cmpi eq, %arg1, %c0_i32 : i32
    %1 = arith.extui %0 : i1 to i32
    %c0_i32_0 = arith.constant 0 : i32
    %2 = arith.cmpi ne, %1, %c0_i32_0 : i32
    scf.if %2 {
      %cst_13 = arith.constant 0.000000e+00 : f32
      %32 = vector.broadcast %cst_13 : f32 to vector<8x128xf32>
      %c0_14 = arith.constant 0 : index
      %c0_15 = arith.constant 0 : index
      %33 = vector.load %arg5[%c0_14, %c0_15] : memref<8x128xf32, #tpu.memory_space<vmem>>, vector<8x128xf32>
      tpu.vector_store %arg5[%c0_14, %c0_15], %32 {strides = array<i32>} : memref<8x128xf32, #tpu.memory_space<vmem>>, vector<8x128xf32>,
    } else {
    }
    %c0 = arith.constant 0 : index
    %c0_1 = arith.constant 0 : index
    %3 = vector.load %arg2[%c0, %c0_1] : memref<8x128xf32, #tpu.memory_space<vmem>>, vector<8x128xf32>
    %cst = arith.constant 5.000000e+00 : f32
    %4 = vector.broadcast %cst : f32 to vector<8x128xf32>
    %5 = arith.addf %4, %3 : vector<8x128xf32>
    %c0_2 = arith.constant 0 : index
    %c0_3 = arith.constant 0 : index
    %6 = vector.load %arg3[%c0_2, %c0_3] : memref<8x128xf32, #tpu.memory_space<vmem>>, vector<8x128xf32>
    %7 = arith.subf %5, %6 : vector<8x128xf32>
    %cst_4 = arith.constant 0.000000e+00 : f32
    %8 = vector.broadcast %cst_4 : f32 to vector<8x128xf32>
    %9 = arith.maximumf %7, %8 : vector<8x128xf32>
    %c1_i32 = arith.constant 1 : i32
    %10 = arith.muli %arg0, %c1_i32 : i32
    %11 = arith.addi %10, %arg1 : i32
    %c8_i32 = arith.constant 8 : i32
    %12 = arith.muli %11, %c8_i32 : i32
    %13 = tpu.iota {dimensions = array<i32: 0>} : vector<8x128xi32>
    %14 = vector.broadcast %12 : i32 to vector<8x128xi32>
    %15 = arith.addi %14, %13 : vector<8x128xi32>
    %c128_i32 = arith.constant 128 : i32
    %16 = vector.broadcast %c128_i32 : i32 to vector<8x128xi32>
    %17 = arith.muli %15, %16 : vector<8x128xi32>
    %18 = tpu.iota {dimensions = array<i32: 1>} : vector<8x128xi32>
    %19 = arith.addi %17, %18 : vector<8x128xi32>
    %c257_i32 = arith.constant 257 : i32
    %20 = vector.broadcast %c257_i32 : i32 to vector<8x128xi32>
    %21 = arith.cmpi slt, %19, %20 : vector<8x128xi32>
    %cst_5 = arith.constant 0.000000e+00 : f32
    %22 = vector.broadcast %cst_5 : f32 to vector<8x128xf32>
    %23 = arith.select %21, %9, %22 : vector<8x128xi1>, vector<8x128xf32>
    %c0_6 = arith.constant 0 : index
    %c0_7 = arith.constant 0 : index
    %24 = vector.load %arg5[%c0_6, %c0_7] : memref<8x128xf32, #tpu.memory_space<vmem>>, vector<8x128xf32>
    %25 = vector.shape_cast %23 : vector<8x128xf32> to vector<1x8x128xf32>
    %cst_8 = arith.constant dense<0.000000e+00> : vector<8x128xf32>
    %26 = vector.multi_reduction <add>, %25, %cst_8 [0] : vector<1x8x128xf32> to vector<8x128xf32>
    %27 = arith.addf %24, %26 : vector<8x128xf32>
    %c0_9 = arith.constant 0 : index
    %c0_10 = arith.constant 0 : index
    %28 = vector.load %arg5[%c0_9, %c0_10] : memref<8x128xf32, #tpu.memory_space<vmem>>, vector<8x128xf32>
    tpu.vector_store %arg5[%c0_9, %c0_10], %27 {strides = array<i32>} : memref<8x128xf32, #tpu.memory_space<vmem>>, vector<8x128xf32>,
    %c0_i32_11 = arith.constant 0 : i32
    %29 = arith.cmpi eq, %arg1, %c0_i32_11 : i32
    %30 = arith.extui %29 : i1 to i32
    %c0_i32_12 = arith.constant 0 : i32
    %31 = arith.cmpi ne, %30, %c0_i32_12 : i32
    scf.if %31 {
      %c0_13 = arith.constant 0 : index
      %c0_14 = arith.constant 0 : index
      %32 = vector.load %arg5[%c0_13, %c0_14] : memref<8x128xf32, #tpu.memory_space<vmem>>, vector<8x128xf32>
      %33 = vector.shape_cast %32 : vector<8x128xf32> to vector<1x8x128xf32>
      %cst_15 = arith.constant dense<0.000000e+00> : vector<1xf32>
      %34 = vector.multi_reduction <add>, %33, %cst_15 [1, 2] : vector<1x8x128xf32> to vector<1xf32>
      %35 = vector.shape_cast %34 : vector<1xf32> to vector<1x1x1xf32>
      %36 = vector.extract %35[0, 0, 0] : f32 from vector<1x1x1xf32>
      %37 = vector.broadcast %36 : f32 to vector<1x1xf32>
      %c0_16 = arith.constant 0 : index
      %c0_17 = arith.constant 0 : index
      %38 = vector.load %arg4[%c0_16, %c0_17] : memref<1x1xf32, #tpu.memory_space<vmem>>, vector<1x1xf32>
      tpu.vector_store %arg4[%c0_16, %c0_17], %37 {strides = array<i32>} : memref<1x1xf32, #tpu.memory_space<vmem>>, vector<1x1xf32>,
    } else {
    }
    return
  }
  func.func @transform_0(%arg0: i32, %arg1: i32) -> (i32, i32) {
    %c1_i32 = arith.constant 1 : i32
    %0 = arith.muli %arg0, %c1_i32 : i32
    %1 = arith.addi %0, %arg1 : i32
    %c0_i32 = arith.constant 0 : i32
    %c0_i32_0 = arith.constant 0 : i32
    return %1, %c0_i32 : i32, i32
  }
  func.func @transform_1(%arg0: i32, %arg1: i32) -> (i32, i32) {
    %c1_i32 = arith.constant 1 : i32
    %0 = arith.muli %arg0, %c1_i32 : i32
    %1 = arith.addi %0, %arg1 : i32
    %c0_i32 = arith.constant 0 : i32
    %c0_i32_0 = arith.constant 0 : i32
    return %1, %c0_i32 : i32, i32
  }
  func.func @transform_2(%arg0: i32, %arg1: i32) -> (i32, i32) {
    %c0_i32 = arith.constant 0 : i32
    %c0_i32_0 = arith.constant 0 : i32
    return %arg0, %c0_i32 : i32, i32
  }
}

</mosaic_0001>

<llo_original>
// kernel: tpu_custom_call.1
$region0: #{tpu_custom_call.1}
  #allocation0 [shape = 'u32[]', space=smem, size = 0x4, offset = 0x4, fixed_abs, tag = 'smem constant byte address 0x4 - core index']
  #allocation1 [shape = 'u32[72,128]{1,0:T(1,128)}', space=vmem, size = 0x9000, scoped, tag = 'internal scratch']
  #allocation2 [shape = 'f32[8,128]{1,0:T(8,128)}', space=vmem, size = 0x1000, scoped, tag = 'scratch operand']
  %s0 = inlined_call_operand.hbm [shape: f32[8,128], index: 0, kind: input, shape index: {}]
  %s1 = inlined_call_operand.hbm [shape: f32[8,128], index: 1, kind: input, shape index: {}]
  %s2 = inlined_call_operand.hbm [shape: f32[1,1], index: 2, kind: output, shape index: {}]
  %s3 = sld [smem:[#allocation0]]
  $region34: #{tpu_custom_call.1} parent=0
    _
  %s5 = ssub.s32 1, %s3
  %s6 = scalar_select 0, %s5, %s3
  $region1: #{tpu_custom_call.1} parent=0
    #allocation3 [shape = 'u8[4096]{0}', space=vmem, size = 0x1000, scoped, tag = 'input window, operand 0, single buffered']
    #allocation4 [shape = 's32[1]{0}', space=sflag, size = 0x4, scoped, tag = 'scoped memory for tpu_custom_call.1']
    #allocation5 [shape = 's32[1]{0}', space=sflag, size = 0x4, scoped, tag = 'scoped memory for tpu_custom_call.1']
    #allocation6 [shape = 'u8[4096]{0}', space=vmem, size = 0x1000, scoped, tag = 'input window, operand 1, single buffered']
    #allocation7 [shape = 's32[1]{0}', space=sflag, size = 0x4, scoped, tag = 'scoped memory for tpu_custom_call.1']
    #allocation8 [shape = 'u8[512]{0}', space=vmem, size = 0x400, scoped, tag = 'output window, operand 0, single buffered']
    %7 = vsyncpa [#allocation4], 0
    %8 = vsyncpa [#allocation7], 0
    %9 = vsyncpa [#allocation5], 0
    // Predicated region
    $region2: #{tpu_custom_call.1} parent=1 // pred_check
      _
    $region3: #{tpu_custom_call.1} parent=1 // pred_check_branch
      %11 = sbr.rel (0) target = $region5
    $region4: #{tpu_custom_call.1} parent=1 // pred_region
      %s12 = sadd.s32 0, 0
      %14 = vsyncadd [#allocation4], 0
      %s15 = smul.addr %s12, 8
      %s16 = scalar_lea.hbm %s0, %s15
      %s18 = sshll.u32 %s16, 4
      %s19 = int_to_ptr.hbm [resolvable:$true] %s18
      %s20 = sshll.u32 [#allocation3], 4
      %s21 = int_to_ptr.vmem [resolvable:$true] %s20
      %23 = dma.hbm_to_vmem [thread:$0]  %s19, 128, %s21, [#allocation4]
    $region5: #{tpu_custom_call.1} parent=1 // pred_fallthru
      _
    // Predicated region
    $region6: #{tpu_custom_call.1} parent=1 // pred_check
      _
    $region7: #{tpu_custom_call.1} parent=1 // pred_check_branch
      %25 = sbr.rel (0) target = $region9
    $region8: #{tpu_custom_call.1} parent=1 // pred_region
      %s26 = sadd.s32 0, 0
      %28 = vsyncadd [#allocation7], 0
      %s29 = smul.addr %s26, 8
      %s30 = scalar_lea.hbm %s1, %s29
      %s32 = sshll.u32 %s30, 4
      %s33 = int_to_ptr.hbm [resolvable:$true] %s32
      %s34 = sshll.u32 [#allocation6], 4
      %s35 = int_to_ptr.vmem [resolvable:$true] %s34
      %37 = dma.hbm_to_vmem [thread:$0]  %s33, 128, %s35, [#allocation7]
    $region9: #{tpu_custom_call.1} parent=1 // pred_fallthru
      _
    // Predicated region
    $region10: #{tpu_custom_call.1} parent=1 // pred_check
      _
    $region11: #{tpu_custom_call.1} parent=1 // pred_check_branch
      %39 = sbr.rel (0) target = $region13
    $region12: #{tpu_custom_call.1} parent=1 // pred_region
      %41 = dma.done [#allocation4], 128
    $region13: #{tpu_custom_call.1} parent=1 // pred_fallthru
      _
    // Predicated region
    $region14: #{tpu_custom_call.1} parent=1 // pred_check
      _
    $region15: #{tpu_custom_call.1} parent=1 // pred_check_branch
      %43 = sbr.rel (0) target = $region17
    $region16: #{tpu_custom_call.1} parent=1 // pred_region
      %45 = dma.done [#allocation7], 128
    $region17: #{tpu_custom_call.1} parent=1 // pred_fallthru
      _
    %s46 = sadd.s32 0, 0
    %s47 = sadd.s32 0, 0
    %p48 = scmp.eq.s32.totalorder 0, 0
    // Predicated region
    $region18: #{tpu_custom_call.1} parent=1 // pred_check
      %p49 = pneg %p48
    $region19: #{tpu_custom_call.1} parent=1 // pred_check_branch
      %51 = sbr.rel (%p49) target = $region21
    $region20: #{tpu_custom_call.1} parent=1 // pred_region
      %52 = vst [vmem:[#allocation2] sm:$0xff] 0.0
    $region21: #{tpu_custom_call.1} parent=1 // pred_fallthru
      _
    %v53 = vld [vmem:[#allocation3] sm:$0xff]
    %v54 = vadd.f32 %v53, 5.0
    %v55 = vld [vmem:[#allocation6] sm:$0xff]
    %v56 = vsub.f32 %v54, %v55
    %v57 = vmax.f32 %v56, 0.0
    %s58 = sadd.s32 0, 0
    %s59 = smul.u32 %s58, 8
    %v60 = vlaneseq
    %v61 = vshrl.u32 %v60, 7
    %v62 = vstv %s59
    %v63 = vadd.s32 %v62, %v61
    %v64 = vmul.u32 %v63, 128
    %v65 = vlaneseq
    %v66 = vand.u32 %v65, 127
    %v67 = vadd.s32 %v64, %v66
    %vm68 = vcmp.lt.s32.totalorder %v67, 257
    %v69 = vsel %vm68, %v57, 0.0
    %v70 = vld [vmem:[#allocation2] sm:$0xff]
    %v71 = vadd.f32 %v69, 0.0
    %v72 = vadd.f32 %v70, %v71
    %73 = vst [vmem:[#allocation2] sm:$0xff] %v72
    // Predicated region
    $region22: #{tpu_custom_call.1} parent=1 // pred_check
      %p74 = pneg %p48
    $region23: #{tpu_custom_call.1} parent=1 // pred_check_branch
      %76 = sbr.rel (%p74) target = $region25
    $region24: #{tpu_custom_call.1} parent=1 // pred_region
      %v77 = vld [vmem:[#allocation2] sm:$0xff]
      %78 = vadd.xlane.f32.xlu0 %v77
      %v79 = vpop.xlane.xlu0 %78
      %v80 = vrot.slane %v79, 4
      %v81 = vadd.f32 %v79, %v80
      %v82 = vrot.slane %v81, 2
      %v83 = vadd.f32 %v81, %v82
      %v84 = vrot.slane %v83, 1
      %v85 = vadd.f32 %v83, %v84
      %s86 = vtos %v85
      %v87 = vstv %s86
      %vm88 = vcmask 0
      %89 = vst.msk [vmem:[#allocation8] sm:$0x1] %vm88, %v87
    $region25: #{tpu_custom_call.1} parent=1 // pred_fallthru
      _
    // Predicated region
    $region26: #{tpu_custom_call.1} parent=1 // pred_check
      _
    $region27: #{tpu_custom_call.1} parent=1 // pred_check_branch
      %91 = sbr.rel (0) target = $region29
    $region28: #{tpu_custom_call.1} parent=1 // pred_region
      %93 = vsyncadd [#allocation5], 0
      %s95 = sshll.u32 [#allocation8], 4
      %s96 = int_to_ptr.vmem [resolvable:$true] %s95
      %s97 = sshll.u32 %s2, 4
      %s98 = int_to_ptr.hbm [resolvable:$true] %s97
      %100 = dma.vmem_to_hbm [thread:$0]  %s96, 16, %s98, [#allocation5]
    $region29: #{tpu_custom_call.1} parent=1 // pred_fallthru
      _
    // Predicated region
    $region30: #{tpu_custom_call.1} parent=1 // pred_check
      _
    $region31: #{tpu_custom_call.1} parent=1 // pred_check_branch
      %102 = sbr.rel (0) target = $region33
    $region32: #{tpu_custom_call.1} parent=1 // pred_region
      %104 = dma.done [#allocation5], 16
    $region33: #{tpu_custom_call.1} parent=1 // pred_fallthru
      _
    %105 = vsyncpa [#allocation4], 1
    %106 = vsyncpa [#allocation7], 1
    %107 = vsyncpa [#allocation5], 1

</llo_original>
